<compile_context>
chip_gen: v6e
topology: v6e:2x2x1
jax: 0.10.0
libtpu: 0.0.40
codegen_flags: <defaults>
</compile_context>

<pallas_src>
import jax
import jax.numpy as jnp
from jax.experimental import pallas as pl
from jax.experimental.pallas import tpu as pltpu

NUM_CLASSES = 23


def _one_hot_kernel(t_ref, o_ref):
    # t_ref: (1, TW) int32 label slab
    # o_ref: (NUM_CLASSES, TW) float32 one-hot slab (lane-dense)
    t = t_ref[...]                                           # (1, TW)
    t = jnp.where(t == -1, 1, t)                             # -1 -> 1 remap
    # Lane-invariant class index column; the compare broadcasts it across
    # lanes and broadcasts t across sublanes -> (NUM_CLASSES, TW) bool.
    cls = jax.lax.broadcasted_iota(jnp.int32, (NUM_CLASSES, 1), 0)
    o_ref[...] = (t == cls).astype(jnp.float32)              # all planes, one store


def _tile_and_vmem_limit():
    """Per-generation max tile (flattened elems) and scoped-VMEM limit."""
    try:
        vmem_cap = pltpu.get_tpu_info().vmem_capacity_bytes
    except Exception:
        vmem_cap = 64 * 1024 * 1024                          # conservative default
    if vmem_cap >= 96 * 1024 * 1024:
        # v5e / v6e: 128 MiB VMEM.  256K tile -> padded 2-buf footprint 64 MiB.
        return 256 * 1024, 80 * 1024 * 1024
    # v7x: 64 MiB VMEM per TC.  128K tile -> padded 2-buf footprint 32 MiB.
    return 128 * 1024, 44 * 1024 * 1024


def _choose_tile(n, max_tile):
    """Lane-dense tile (multiple of 128) giving >= 2 grid steps, capped at max_tile."""
    if n <= 128:
        return n                                             # single full-extent block
    half = pl.cdiv(n, 2)
    tw = (half // 128) * 128                                 # round down to lanes
    return max(128, min(max_tile, tw))


def compute_prediction(target_image):
    """One-hot (1, 23, H, W) float32 prediction for an (H, W) int label map."""
    H, W = target_image.shape
    n = H * W
    max_tile, vmem_limit = _tile_and_vmem_limit()
    tw = _choose_tile(n, max_tile)
    grid = (pl.cdiv(n, tw),)                                 # ragged last block masked

    t_flat = target_image.reshape(1, n).astype(jnp.int32)

    out_flat = pl.pallas_call(
        _one_hot_kernel,
        out_shape=jax.ShapeDtypeStruct((NUM_CLASSES, n), jnp.float32),
        grid=grid,
        in_specs=[pl.BlockSpec((1, tw), lambda i: (0, i))],
        out_specs=pl.BlockSpec((NUM_CLASSES, tw), lambda i: (0, i)),
        compiler_params=pltpu.CompilerParams(
            dimension_semantics=("parallel",),               # v7x: shard across 2 TCs
            vmem_limit_bytes=vmem_limit,
        ),
        cost_estimate=pl.CostEstimate(
            flops=n * NUM_CLASSES,
            transcendentals=0,
            bytes_accessed=n * 4 + NUM_CLASSES * n * 4,
        ),
    )(t_flat)

    # Free layout plumbing: (23, H*W) -> (1, 23, H, W) row-major reshape.
    return out_flat.reshape(NUM_CLASSES, H, W)[None]


class DummySegmentationModel:
    """Mirror of the PyTorch module: prediction is built once in __init__;
    forward(x) ignores x and returns the cached float32 tensor."""

    def __init__(self, target_image):
        self.prediction = jax.block_until_ready(compute_prediction(target_image))

    def forward(self, x):
        return self.prediction

    __call__ = forward


if __name__ == "__main__":
    key = jax.random.PRNGKey(0)
    H = W = 16

    # Deterministic synthetic "target image" with labels in [-1, 22]
    # (includes -1 to exercise the -1 -> 1 remap).
    k_t, k_x = jax.random.split(key)
    target_image = jax.random.randint(
        k_t, (H, W), minval=-1, maxval=NUM_CLASSES, dtype=jnp.int32
    )
    # forward()'s input is ignored by the module, but construct it anyway.
    x = jax.random.normal(k_x, (2, 4, H, W), dtype=jnp.float32)

    model = DummySegmentationModel(target_image)
    pred = model.forward(x)
    pred = jax.block_until_ready(pred)

    # Reference check (plain JAX) for the same semantics.
    t_fixed = jnp.where(target_image == -1, 1, target_image)
    ref = jax.nn.one_hot(t_fixed, NUM_CLASSES, dtype=jnp.float32)  # (H, W, 23)
    ref = jnp.transpose(ref, (2, 0, 1))[None]                      # (1, 23, H, W)

    assert pred.shape == (1, NUM_CLASSES, H, W), pred.shape
    assert pred.dtype == jnp.float32, pred.dtype
    assert jnp.array_equal(pred, ref), "Pallas output mismatch vs reference"

    print("KERNEL_OK")
</pallas_src>

<mosaic_0001>
module attributes {stable_mosaic.version = 11 : i64} {
  func.func @_one_hot_kernel(%arg0: i32, %arg1: memref<1x128xi32, #tpu.memory_space<vmem>>, %arg2: memref<23x128xf32, #tpu.memory_space<vmem>>) attributes {dimension_semantics = [#tpu.dimension_semantics<parallel>], iteration_bounds = array<i64: 2>, scalar_prefetch = 0 : i64, scratch_operands = 0 : i64, tpu.core_type = #tpu.core_type<tc>, window_params = [{transform_indices = @transform_0, window_bounds = array<i64: 1, 128>}, {transform_indices = @transform_1, window_bounds = array<i64: 23, 128>}]} {
    %c0 = arith.constant 0 : index
    %c0_0 = arith.constant 0 : index
    %0 = vector.load %arg1[%c0, %c0_0] : memref<1x128xi32, #tpu.memory_space<vmem>>, vector<1x128xi32>
    %c-1_i32 = arith.constant -1 : i32
    %1 = vector.broadcast %c-1_i32 : i32 to vector<1x128xi32>
    %2 = arith.cmpi eq, %0, %1 : vector<1x128xi32>
    %c1_i32 = arith.constant 1 : i32
    %3 = vector.broadcast %c1_i32 : i32 to vector<1x128xi32>
    %4 = arith.select %2, %3, %0 : vector<1x128xi1>, vector<1x128xi32>
    %5 = tpu.iota {dimensions = array<i32: 0>} : vector<23x1xi32>
    %6 = vector.broadcast %4 : vector<1x128xi32> to vector<23x128xi32>
    %7 = vector.broadcast %5 : vector<23x1xi32> to vector<23x128xi32>
    %8 = arith.cmpi eq, %6, %7 : vector<23x128xi32>
    %9 = arith.extui %8 : vector<23x128xi1> to vector<23x128xi32>
    %10 = arith.sitofp %9 : vector<23x128xi32> to vector<23x128xf32>
    %c0_1 = arith.constant 0 : index
    %c0_2 = arith.constant 0 : index
    %11 = vector.load %arg2[%c0_1, %c0_2] : memref<23x128xf32, #tpu.memory_space<vmem>>, vector<23x128xf32>
    tpu.vector_store %arg2[%c0_1, %c0_2], %10 {strides = array<i32>} : memref<23x128xf32, #tpu.memory_space<vmem>>, vector<23x128xf32>,
    return
  }
  func.func @transform_0(%arg0: i32) -> (i32, i32) {
    %c0_i32 = arith.constant 0 : i32
    %c0_i32_0 = arith.constant 0 : i32
    return %c0_i32, %arg0 : i32, i32
  }
  func.func @transform_1(%arg0: i32) -> (i32, i32) {
    %c0_i32 = arith.constant 0 : i32
    %c0_i32_0 = arith.constant 0 : i32
    return %c0_i32, %arg0 : i32, i32
  }
}

</mosaic_0001>

<llo_original>
// kernel: tpu_custom_call.1
$region0: #{tpu_custom_call.1}
  #allocation0 [shape = 'u32[]', space=smem, size = 0x4, offset = 0x4, fixed_abs, tag = 'smem constant byte address 0x4 - core index']
  #allocation1 [shape = 'u32[144,128]{1,0:T(1,128)}', space=vmem, size = 0x12000, scoped, tag = 'internal scratch']
  %s0 = inlined_call_operand.hbm [shape: s32[1,256], index: 0, kind: input, shape index: {}]
  %s1 = inlined_call_operand.hbm [shape: f32[23,256], index: 1, kind: output, shape index: {}]
  %s2 = sld [smem:[#allocation0]]
  $region41: #{tpu_custom_call.1} parent=0
    _
  %s4 = ssub.s32 1, %s2
  %s5 = scalar_select 0, %s4, %s2
  $region1: #{tpu_custom_call.1} parent=0
    #allocation2 [shape = 'u8[1024]{0}', space=vmem, size = 0x400, scoped, tag = 'input window, operand 0']
    #allocation3 [shape = 's32[2]{0}', space=sflag, size = 0x8, scoped, tag = 'scoped memory for tpu_custom_call.1']
    #allocation4 [shape = 's32[2]{0}', space=sflag, size = 0x8, scoped, tag = 'scoped memory for tpu_custom_call.1']
    #allocation5 [shape = 'u8[24576]{0}', space=vmem, size = 0x6000, scoped, tag = 'output window, operand 0']
    %6 = vsyncpa [#allocation3], 0
    %s7 = scalar_lea.sflag [#allocation3], 1
    %8 = vsyncpa %s7, 0
    %9 = vsyncpa [#allocation4], 0
    %s10 = scalar_lea.sflag [#allocation4], 1
    %11 = vsyncpa %s10, 0
    loop: start=0, step=1, limit=4
    $region2: #{tpu_custom_call.1} parent=1 // loop_pre_header
      _
    $region3: #{tpu_custom_call.1} parent=1 // loop_header
      %s13 = sphi 0, %s17
      %p14 = scmp.ge.s32.totalorder %s13, 4
      %s23 = sphi 0, %s25
      %s26 = sphi 0, %s23
      %s27 = sphi 0, %s26
      %s43 = sphi 0, %s27
      %s49 = sphi 0, %s51
      %s52 = sphi 0, %s49
      %s53 = sphi 0, %s52
      %s69 = sphi 0, %s53
    $region4: #{tpu_custom_call.1} parent=1 // loop_header_branch
      %16 = sbr.rel (%p14) target = $region8
    $region5: #{tpu_custom_call.1} parent=1 // loop_body
      %s18 = ssub.s32 %s13, 1
      %s19 = ssub.s32 %s13, 2
      %s20 = sadd.s32 %s13, 1
      %s21 = ssub.s32 %s13, %s20
      %p22 = scmp.eq.s32.totalorder %s21, 0
      %s24 = sadd.s32 %s23, 1
      %s25 = scalar_select %p22, %s23, %s24
      %p28 = pneg %p22
      %p29 = scmp.eq.s32.totalorder %s13, 1
      %p30 = por %p28, %p29
      %p31 = scmp.ne.s32.totalorder %s23, %s26
      %p32 = scmp.eq.s32.totalorder %s13, 0
      %p33 = por %p31, %p32
      %p34 = scmp.ne.s32.totalorder %s23, %s26
      %p35 = scmp.eq.s32.totalorder %s18, 1
      %p36 = por %p34, %p35
      %p37 = scmp.ne.s32.totalorder %s26, %s27
      %p38 = scmp.eq.s32.totalorder %s18, 0
      %p39 = por %p37, %p38
      %p40 = scmp.ne.s32.totalorder %s26, %s27
      %p41 = scmp.eq.s32.totalorder %s19, 1
      %p42 = por %p40, %p41
      %p44 = scmp.ne.s32.totalorder %s27, %s43
      %p45 = scmp.eq.s32.totalorder %s19, 0
      %p46 = por %p44, %p45
      %s47 = ssub.s32 %s13, %s20
      %p48 = scmp.eq.s32.totalorder %s47, 0
      %s50 = sadd.s32 %s49, 1
      %s51 = scalar_select %p48, %s49, %s50
      %p54 = pneg %p48
      %p55 = scmp.eq.s32.totalorder %s13, 1
      %p56 = por %p54, %p55
      %p57 = scmp.ne.s32.totalorder %s49, %s52
      %p58 = scmp.eq.s32.totalorder %s13, 0
      %p59 = por %p57, %p58
      %p60 = scmp.ne.s32.totalorder %s49, %s52
      %p61 = scmp.eq.s32.totalorder %s18, 1
      %p62 = por %p60, %p61
      %p63 = scmp.ne.s32.totalorder %s52, %s53
      %p64 = scmp.eq.s32.totalorder %s18, 0
      %p65 = por %p63, %p64
      %p66 = scmp.ne.s32.totalorder %s52, %s53
      %p67 = scmp.eq.s32.totalorder %s19, 1
      %p68 = por %p66, %p67
      %p70 = scmp.ne.s32.totalorder %s53, %s69
      %p71 = scmp.eq.s32.totalorder %s19, 0
      %p72 = por %p70, %p71
      %p73 = scmp.le.s32.totalorder 1, %s13
      %p74 = scmp.lt.s32.totalorder %s13, 3
      %p75 = pnand %p73, %p74
      %p76 = pneg %p75
      // Predicated region
      $region9: #{tpu_custom_call.1} parent=5 // pred_check
        _
      $region10: #{tpu_custom_call.1} parent=5 // pred_check_branch
        %78 = sbr.rel (%p75) target = $region12
      $region11: #{tpu_custom_call.1} parent=5 // pred_region
        %s79 = ssub.s32 %s13, 1
      $region12: #{tpu_custom_call.1} parent=5 // pred_fallthru
        _
      %p80 = scmp.lt.s32.totalorder %s13, 2
      // Predicated region
      $region13: #{tpu_custom_call.1} parent=5 // pred_check
        %p81 = pneg %p80
      $region14: #{tpu_custom_call.1} parent=5 // pred_check_branch
        %83 = sbr.rel (%p81) target = $region16
      $region15: #{tpu_custom_call.1} parent=5 // pred_region
        // Predicated region
        $region17: #{tpu_custom_call.1} parent=15 // pred_check
          %p84 = pneg %p33
        $region18: #{tpu_custom_call.1} parent=15 // pred_check_branch
          %86 = sbr.rel (%p84) target = $region20
        $region19: #{tpu_custom_call.1} parent=15 // pred_region
          %s87 = sand.u32 %s23, 1
          %s88 = scalar_lea.sflag [#allocation3], %s87
          %s89 = sand.u32 %s23, 1
          %s90 = scalar_lea.vmem [#allocation2], %s89
          %s92 = ssub.s32 16, 16
          %93 = vsyncadd %s88, %s92
          %s94 = smul.addr %s13, 16
          %s95 = scalar_lea.hbm %s0, %s94
          %s97 = sshll.u32 %s90, 4
          %s98 = int_to_ptr.vmem [resolvable:$true] %s97
          %100 = dma.hbm_to_vmem [thread:$0]  %s95, 16, %s98, %s88
        $region20: #{tpu_custom_call.1} parent=15 // pred_fallthru
          _
      $region16: #{tpu_custom_call.1} parent=5 // pred_fallthru
        _
      %p101 = scmp.le.s32.totalorder 1, %s13
      %p102 = scmp.lt.s32.totalorder %s13, 3
      %p103 = pnand %p101, %p102
      %p104 = pneg %p103
      // Predicated region
      $region21: #{tpu_custom_call.1} parent=5 // pred_check
        _
      $region22: #{tpu_custom_call.1} parent=5 // pred_check_branch
        %106 = sbr.rel (%p103) target = $region24
      $region23: #{tpu_custom_call.1} parent=5 // pred_region
        %s107 = ssub.s32 %s13, 1
        %s108 = sand.u32 %s26, 1
        %s109 = scalar_lea.sflag [#allocation3], %s108
        %s110 = sand.u32 %s26, 1
        %s111 = scalar_lea.vmem [#allocation2], %s110
        // Predicated region
        $region25: #{tpu_custom_call.1} parent=23 // pred_check
          %p112 = pneg %p39
        $region26: #{tpu_custom_call.1} parent=23 // pred_check_branch
          %114 = sbr.rel (%p112) target = $region28
        $region27: #{tpu_custom_call.1} parent=23 // pred_region
          %115 = dma.done %s109, 16
        $region28: #{tpu_custom_call.1} parent=23 // pred_fallthru
          _
        %s116 = sand.u32 %s26, 1
        %s117 = scalar_lea.sflag [#allocation3], %s116
        %s118 = sand.u32 %s26, 1
        %s119 = scalar_lea.vmem [#allocation2], %s118
        %p120 = pneg %p39
        %p121 = pneg %p36
        %p122 = pneg %p65
        %p123 = pneg %p62
        %s124 = sand.u32 %s52, 1
        %s125 = scalar_lea.sflag [#allocation4], %s124
        %s126 = sand.u32 %s52, 1
        %s127 = smul.addr %s126, 24
        %s128 = scalar_lea.vmem [#allocation5], %s127
        %v129 = vld [vmem:[%s111] sm:$0x1]
        %vm130 = vcmp.eq.s32.totalorder %v129, 4294967295
        %v131 = vsel %vm130, 1, %v129
        %v132 = vlaneseq
        %v133 = vshrl.u32 %v132, 7
        %v134 = vadd.s32 %v133, 8
        %v135 = vadd.s32 %v133, 16
        %v136 = vlaneseq
        %v137 = vshrl.u32 %v136, 7
        %v138 = vsub.s32 0, %v137
        %v139 = vrot.slane %v131, %v138
        %vm140 = vcmp.eq.s32.totalorder %v139, %v133
        %vm141 = vcmp.eq.s32.totalorder %v139, %v134
        %vm142 = vcmp.eq.s32.totalorder %v139, %v135
        %v143 = vsel %vm140, 1, 0
        %v144 = vsel %vm141, 1, 0
        %v145 = vsel %vm142, 1, 0
        %v146 = vcvt.s32.f32 %v143
        %v147 = vcvt.s32.f32 %v144
        %v148 = vcvt.s32.f32 %v145
        %149 = vst [vmem:[%s128] sm:$0xff] %v146
        %150 = vst [vmem:[%s128 + $0x8] sm:$0xff] %v147
        %151 = vst [vmem:[%s128 + $0x10] sm:$0x7f] %v148
        %s152 = sand.u32 %s52, 1
        %s153 = scalar_lea.sflag [#allocation4], %s152
        %s154 = sand.u32 %s52, 1
        %s155 = smul.addr %s154, 24
        %s156 = scalar_lea.vmem [#allocation5], %s155
        // Predicated region
        $region29: #{tpu_custom_call.1} parent=23 // pred_check
          %p157 = pneg %p62
        $region30: #{tpu_custom_call.1} parent=23 // pred_check_branch
          %159 = sbr.rel (%p157) target = $region32
        $region31: #{tpu_custom_call.1} parent=23 // pred_region
          %s161 = ssub.s32 384, 384
          %162 = vsyncadd %s153, %s161
          %s163 = smul.addr %s18, 128
          %s164 = scalar_lea.hbm %s1, %s163
          %s165 = sshll.u32 %s156, 4
          %s166 = int_to_ptr.vmem [resolvable:$true] %s165
          %171 = dma.vmem_to_hbm [thread:$0]  %s166, 384, %s164, %s153, 128, 256, 8
        $region32: #{tpu_custom_call.1} parent=23 // pred_fallthru
          _
      $region24: #{tpu_custom_call.1} parent=5 // pred_fallthru
        _
      %p172 = scmp.le.s32.totalorder 2, %s13
      // Predicated region
      $region33: #{tpu_custom_call.1} parent=5 // pred_check
        %p173 = pneg %p172
      $region34: #{tpu_custom_call.1} parent=5 // pred_check_branch
        %175 = sbr.rel (%p173) target = $region36
      $region35: #{tpu_custom_call.1} parent=5 // pred_region
        %s176 = ssub.s32 %s13, 2
        // Predicated region
        $region37: #{tpu_custom_call.1} parent=35 // pred_check
          %p177 = pneg %p68
        $region38: #{tpu_custom_call.1} parent=35 // pred_check_branch
          %179 = sbr.rel (%p177) target = $region40
        $region39: #{tpu_custom_call.1} parent=35 // pred_region
          %s180 = sand.u32 %s53, 1
          %s181 = scalar_lea.sflag [#allocation4], %s180
          %s182 = sand.u32 %s53, 1
          %s183 = smul.addr %s182, 24
          %s184 = scalar_lea.vmem [#allocation5], %s183
          %185 = dma.done %s181, 384
        $region40: #{tpu_custom_call.1} parent=35 // pred_fallthru
          _
      $region36: #{tpu_custom_call.1} parent=5 // pred_fallthru
        _
    $region6: #{tpu_custom_call.1} parent=1 // loop_footer
      %s17 = sadd.s32 1, %s13
    $region7: #{tpu_custom_call.1} parent=1 // loop_footer_branch
      %12 = sbr.rel target = $region3
    $region8: #{tpu_custom_call.1} parent=1 // loop_exit
      _
    %186 = vsyncpa [#allocation3], 1
    %s187 = scalar_lea.sflag [#allocation3], 1
    %188 = vsyncpa %s187, 1
    %189 = vsyncpa [#allocation4], 1
    %s190 = scalar_lea.sflag [#allocation4], 1
    %191 = vsyncpa %s190, 1

</llo_original>
